<compile_context>
chip_gen: v5e
topology: v5e:2x2
jax: 0.10.0
libtpu: 0.0.40
codegen_flags: <defaults>
</compile_context>

<pallas_src>
import jax
import jax.numpy as jnp
from jax.experimental import pallas as pl
from jax.experimental.pallas import tpu as pltpu

BN_EPS = 1e-5


# --------------------------------------------------------------------------- #
# Kernels
# --------------------------------------------------------------------------- #
def _cell_kernel_first_step(
    x_ref,          # [N, F]
    w_in_ref,       # [F, H]    BN-folded fcIn weight (pre-transposed)
    b_in_ref,       # [1, H]    BN-folded fcIn bias
    w_ih_ref,       # [4, H, H] per-gate input->hidden weights (pre-transposed; i,f,g,o)
    b_g_ref,        # [4, 1, H] per-gate bias (b_ih + b_hh)
    w_out_ref,      # [H, O]    fcOut weight (pre-transposed)
    b_out_ref,      # [1, O]
    out_ref, h1_ref, c1_ref,    # outputs: [N, O], [N, H], [N, H]
):
    """Specialized hidden=None step: h0 == c0 == 0, so w_hh and the forget gate drop out."""
    x = x_ref[...]

    # fcIn (BN already folded in) + ReLU; Dropout is identity in eval mode.
    z = jnp.maximum(
        jnp.dot(x, w_in_ref[...], preferred_element_type=jnp.float32) + b_in_ref[...],
        0.0,
    )

    def gate(k):
        return jnp.dot(z, w_ih_ref[k], preferred_element_type=jnp.float32) + b_g_ref[k]

    i_g = jax.nn.sigmoid(gate(0))
    # forget gate skipped: f_g * c0 == 0 when hidden is None
    g_g = jnp.tanh(gate(2))
    o_g = jax.nn.sigmoid(gate(3))

    c1 = i_g * g_g
    h1 = o_g * jnp.tanh(c1)
    out = jnp.dot(h1, w_out_ref[...], preferred_element_type=jnp.float32) + b_out_ref[...]

    out_ref[...] = out.astype(out_ref.dtype)
    h1_ref[...] = h1.astype(h1_ref.dtype)
    c1_ref[...] = c1.astype(c1_ref.dtype)


def _cell_kernel(
    x_ref,          # [N, F]
    w_in_ref,       # [F, H]
    b_in_ref,       # [1, H]
    w_ih_ref,       # [4, H, H]
    w_hh_ref,       # [4, H, H]
    b_g_ref,        # [4, 1, H]
    w_out_ref,      # [H, O]
    b_out_ref,      # [1, O]
    h0_ref, c0_ref,             # [N, H] each
    out_ref, h1_ref, c1_ref,    # outputs: [N, O], [N, H], [N, H]
):
    """General step with a provided (h0, c0)."""
    x = x_ref[...]
    h0 = h0_ref[...]
    c0 = c0_ref[...]

    z = jnp.maximum(
        jnp.dot(x, w_in_ref[...], preferred_element_type=jnp.float32) + b_in_ref[...],
        0.0,
    )

    def gate(k):
        return (
            jnp.dot(z, w_ih_ref[k], preferred_element_type=jnp.float32)
            + jnp.dot(h0, w_hh_ref[k], preferred_element_type=jnp.float32)
            + b_g_ref[k]
        )

    i_g = jax.nn.sigmoid(gate(0))
    f_g = jax.nn.sigmoid(gate(1))
    g_g = jnp.tanh(gate(2))
    o_g = jax.nn.sigmoid(gate(3))

    c1 = f_g * c0 + i_g * g_g
    h1 = o_g * jnp.tanh(c1)
    out = jnp.dot(h1, w_out_ref[...], preferred_element_type=jnp.float32) + b_out_ref[...]

    out_ref[...] = out.astype(out_ref.dtype)
    h1_ref[...] = h1.astype(h1_ref.dtype)
    c1_ref[...] = c1.astype(c1_ref.dtype)


# --------------------------------------------------------------------------- #
# Host-side parameter folding + wrapper
# --------------------------------------------------------------------------- #
def _fold_params(params):
    """Fold BN into fcIn, pre-transpose all Linears, split LSTM gate weights per gate."""
    H = params["w_in"].shape[0]

    scale = params["bn_g"] / jnp.sqrt(params["bn_v"] + BN_EPS)          # [1, F]
    shift = params["bn_b"] - params["bn_m"] * scale                     # [1, F]
    w_in_f = (params["w_in"] * scale).T                                 # [F, H]
    b_in_f = params["b_in"] + shift @ params["w_in"].T                  # [1, H]

    # PyTorch LSTMCell layout: weight_[ih|hh] is [4H, H], gate order (i, f, g, o).
    w_ih_g = jnp.transpose(params["w_ih"].reshape(4, H, H), (0, 2, 1))  # [4, H_in, H_out]
    w_hh_g = jnp.transpose(params["w_hh"].reshape(4, H, H), (0, 2, 1))  # [4, H_in, H_out]
    b_g = (params["b_ih"] + params["b_hh"]).reshape(4, 1, H)            # [4, 1, H]

    w_out_t = params["w_out"].T                                         # [H, O]
    return w_in_f, b_in_f, w_ih_g, w_hh_g, b_g, w_out_t, params["b_out"]


def dyn_paras_lstm_cell(x, params, hidden=None):
    """Single-call kernel; shapes are small so whole arrays live in VMEM (no grid)."""
    N, _F = x.shape
    H = params["w_in"].shape[0]
    O = params["w_out"].shape[0]

    w_in_f, b_in_f, w_ih_g, w_hh_g, b_g, w_out_t, b_out = _fold_params(params)

    vmem = pl.BlockSpec(memory_space=pltpu.MemorySpace.VMEM)
    out_shape = (
        jax.ShapeDtypeStruct((N, O), jnp.float32),
        jax.ShapeDtypeStruct((N, H), jnp.float32),
        jax.ShapeDtypeStruct((N, H), jnp.float32),
    )

    if hidden is None:
        out, h1, c1 = pl.pallas_call(
            _cell_kernel_first_step,
            out_shape=out_shape,
            in_specs=[vmem] * 7,
            out_specs=(vmem, vmem, vmem),
        )(x, w_in_f, b_in_f, w_ih_g, b_g, w_out_t, b_out)
    else:
        h0, c0 = hidden
        out, h1, c1 = pl.pallas_call(
            _cell_kernel,
            out_shape=out_shape,
            in_specs=[vmem] * 10,
            out_specs=(vmem, vmem, vmem),
        )(x, w_in_f, b_in_f, w_ih_g, w_hh_g, b_g, w_out_t, b_out, h0, c0)
    return out, (h1, c1)


# --------------------------------------------------------------------------- #
# Synthetic init + pure-JAX reference
# --------------------------------------------------------------------------- #
def init_params(key, in_lstm, hid_lstm, out_lstm):
    """Deterministic synthetic init (PyTorch-like uniform ranges, non-trivial BN stats)."""
    ks = jax.random.split(key, 12)

    def unif(k, shape, bound):
        return jax.random.uniform(k, shape, jnp.float32, -bound, bound)

    b_in_lin = 1.0 / jnp.sqrt(in_lstm)
    b_hid = 1.0 / jnp.sqrt(hid_lstm)

    return {
        # Non-trivial BN running stats so the BN->Linear fold is actually exercised.
        "bn_g": 1.0 + 0.1 * jax.random.normal(ks[8], (1, in_lstm), jnp.float32),
        "bn_b": 0.1 * jax.random.normal(ks[9], (1, in_lstm), jnp.float32),
        "bn_m": 0.1 * jax.random.normal(ks[10], (1, in_lstm), jnp.float32),
        "bn_v": jax.random.uniform(ks[11], (1, in_lstm), jnp.float32, 0.5, 1.5),
        # fcIn
        "w_in": unif(ks[0], (hid_lstm, in_lstm), b_in_lin),
        "b_in": unif(ks[1], (1, hid_lstm), b_in_lin),
        # LSTMCell
        "w_ih": unif(ks[2], (4 * hid_lstm, hid_lstm), b_hid),
        "b_ih": unif(ks[3], (1, 4 * hid_lstm), b_hid),
        "w_hh": unif(ks[4], (4 * hid_lstm, hid_lstm), b_hid),
        "b_hh": unif(ks[5], (1, 4 * hid_lstm), b_hid),
        # fcOut
        "w_out": unif(ks[6], (out_lstm, hid_lstm), b_hid),
        "b_out": unif(ks[7], (1, out_lstm), b_hid),
    }


def reference_forward(x, params, hidden=None):
    """Pure-JAX, unfused reference (matches PyTorch eval-mode forward)."""
    N = x.shape[0]
    H = params["w_in"].shape[0]
    h0, c0 = (jnp.zeros((N, H)), jnp.zeros((N, H))) if hidden is None else hidden
    xn = (x - params["bn_m"]) / jnp.sqrt(params["bn_v"] + BN_EPS) * params["bn_g"] + params["bn_b"]
    z = jnp.maximum(xn @ params["w_in"].T + params["b_in"], 0.0)
    gates = z @ params["w_ih"].T + params["b_ih"] + h0 @ params["w_hh"].T + params["b_hh"]
    i_g = jax.nn.sigmoid(gates[:, 0 * H:1 * H])
    f_g = jax.nn.sigmoid(gates[:, 1 * H:2 * H])
    g_g = jnp.tanh(gates[:, 2 * H:3 * H])
    o_g = jax.nn.sigmoid(gates[:, 3 * H:4 * H])
    c1 = f_g * c0 + i_g * g_g
    h1 = o_g * jnp.tanh(c1)
    out = h1 @ params["w_out"].T + params["b_out"]
    return out, (h1, c1)


if __name__ == "__main__":
    N, IN_LSTM, HID_LSTM, OUT_LSTM = 8, 16, 32, 8

    key = jax.random.PRNGKey(0)
    k_x, k_p = jax.random.split(key)
    x = jax.random.normal(k_x, (N, IN_LSTM), jnp.float32)
    params = init_params(k_p, IN_LSTM, HID_LSTM, OUT_LSTM)

    # Step 1: hidden=None (specialized kernel path)
    out, (h1, c1) = dyn_paras_lstm_cell(x, params, hidden=None)
    jax.block_until_ready((out, h1, c1))

    ref_out, (ref_h1, ref_c1) = reference_forward(x, params, hidden=None)
    assert jnp.allclose(out, ref_out, atol=1e-4, rtol=1e-4)
    assert jnp.allclose(h1, ref_h1, atol=1e-4, rtol=1e-4)
    assert jnp.allclose(c1, ref_c1, atol=1e-4, rtol=1e-4)

    # Step 2: feed hidden state back (general kernel path)
    out2, (h2, c2) = dyn_paras_lstm_cell(x, params, hidden=(h1, c1))
    jax.block_until_ready((out2, h2, c2))

    ref_out2, (ref_h2, ref_c2) = reference_forward(x, params, hidden=(ref_h1, ref_c1))
    assert jnp.allclose(out2, ref_out2, atol=1e-4, rtol=1e-4)
    assert jnp.allclose(h2, ref_h2, atol=1e-4, rtol=1e-4)
    assert jnp.allclose(c2, ref_c2, atol=1e-4, rtol=1e-4)

    print("KERNEL_OK")
</pallas_src>

<mosaic_0001>
module attributes {stable_mosaic.version = 11 : i64} {
  func.func @_cell_kernel_first_step(%arg0: memref<8x16xf32, #tpu.memory_space<vmem>>, %arg1: memref<16x32xf32, #tpu.memory_space<vmem>>, %arg2: memref<1x32xf32, #tpu.memory_space<vmem>>, %arg3: memref<4x32x32xf32, #tpu.memory_space<vmem>>, %arg4: memref<4x1x32xf32, #tpu.memory_space<vmem>>, %arg5: memref<32x8xf32, #tpu.memory_space<vmem>>, %arg6: memref<1x8xf32, #tpu.memory_space<vmem>>, %arg7: memref<8x8xf32, #tpu.memory_space<vmem>>, %arg8: memref<8x32xf32, #tpu.memory_space<vmem>>, %arg9: memref<8x32xf32, #tpu.memory_space<vmem>>) attributes {dimension_semantics = [], scalar_prefetch = 0 : i64, scratch_operands = 0 : i64, tpu.core_type = #tpu.core_type<tc>} {
    %c0 = arith.constant 0 : index
    %c0_0 = arith.constant 0 : index
    %0 = vector.load %arg0[%c0, %c0_0] : memref<8x16xf32, #tpu.memory_space<vmem>>, vector<8x16xf32>
    %c0_1 = arith.constant 0 : index
    %c0_2 = arith.constant 0 : index
    %1 = vector.load %arg1[%c0_1, %c0_2] : memref<16x32xf32, #tpu.memory_space<vmem>>, vector<16x32xf32>
    %cst = arith.constant dense<0.000000e+00> : vector<8x32xf32>
    %2 = tpu.matmul %0, %1, %cst {dimension_numbers = #tpu.dot_dimension_numbers<[1], [0], [0], [1], [0, 0, 1, 1], [], []>} : vector<8x16xf32>, vector<16x32xf32>, vector<8x32xf32> -> vector<8x32xf32>
    %c0_3 = arith.constant 0 : index
    %c0_4 = arith.constant 0 : index
    %3 = vector.load %arg2[%c0_3, %c0_4] : memref<1x32xf32, #tpu.memory_space<vmem>>, vector<1x32xf32>
    %4 = vector.broadcast %3 : vector<1x32xf32> to vector<8x32xf32>
    %5 = arith.addf %2, %4 : vector<8x32xf32>
    %cst_5 = arith.constant 0.000000e+00 : f32
    %6 = vector.broadcast %cst_5 : f32 to vector<8x32xf32>
    %7 = arith.maximumf %5, %6 : vector<8x32xf32>
    %c0_6 = arith.constant 0 : index
    %c0_7 = arith.constant 0 : index
    %c0_8 = arith.constant 0 : index
    %8 = vector.load %arg3[%c0_6, %c0_7, %c0_8] : memref<4x32x32xf32, #tpu.memory_space<vmem>>, vector<1x32x32xf32>
    %9 = vector.shape_cast %8 : vector<1x32x32xf32> to vector<32x32xf32>
    %cst_9 = arith.constant dense<0.000000e+00> : vector<8x32xf32>
    %10 = tpu.matmul %7, %9, %cst_9 {dimension_numbers = #tpu.dot_dimension_numbers<[1], [0], [0], [1], [0, 0, 1, 1], [], []>} : vector<8x32xf32>, vector<32x32xf32>, vector<8x32xf32> -> vector<8x32xf32>
    %c0_10 = arith.constant 0 : index
    %c0_11 = arith.constant 0 : index
    %c0_12 = arith.constant 0 : index
    %11 = vector.load %arg4[%c0_10, %c0_11, %c0_12] : memref<4x1x32xf32, #tpu.memory_space<vmem>>, vector<1x1x32xf32>
    %12 = vector.shape_cast %11 : vector<1x1x32xf32> to vector<1x32xf32>
    %13 = vector.broadcast %12 : vector<1x32xf32> to vector<8x32xf32>
    %14 = arith.addf %10, %13 : vector<8x32xf32>
    %15 = arith.negf %14 : vector<8x32xf32>
    %16 = math.exp %15 : vector<8x32xf32>
    %cst_13 = arith.constant 1.000000e+00 : f32
    %17 = vector.broadcast %cst_13 : f32 to vector<8x32xf32>
    %18 = arith.addf %17, %16 : vector<8x32xf32>
    %19 = arith.divf %17, %18 : vector<8x32xf32>
    %c2 = arith.constant 2 : index
    %c0_14 = arith.constant 0 : index
    %c0_15 = arith.constant 0 : index
    %20 = vector.load %arg3[%c2, %c0_14, %c0_15] : memref<4x32x32xf32, #tpu.memory_space<vmem>>, vector<1x32x32xf32>
    %21 = vector.shape_cast %20 : vector<1x32x32xf32> to vector<32x32xf32>
    %cst_16 = arith.constant dense<0.000000e+00> : vector<8x32xf32>
    %22 = tpu.matmul %7, %21, %cst_16 {dimension_numbers = #tpu.dot_dimension_numbers<[1], [0], [0], [1], [0, 0, 1, 1], [], []>} : vector<8x32xf32>, vector<32x32xf32>, vector<8x32xf32> -> vector<8x32xf32>
    %c2_17 = arith.constant 2 : index
    %c0_18 = arith.constant 0 : index
    %c0_19 = arith.constant 0 : index
    %23 = vector.load %arg4[%c2_17, %c0_18, %c0_19] : memref<4x1x32xf32, #tpu.memory_space<vmem>>, vector<1x1x32xf32>
    %24 = vector.shape_cast %23 : vector<1x1x32xf32> to vector<1x32xf32>
    %25 = vector.broadcast %24 : vector<1x32xf32> to vector<8x32xf32>
    %26 = arith.addf %22, %25 : vector<8x32xf32>
    %27 = math.tanh %26 : vector<8x32xf32>
    %c3 = arith.constant 3 : index
    %c0_20 = arith.constant 0 : index
    %c0_21 = arith.constant 0 : index
    %28 = vector.load %arg3[%c3, %c0_20, %c0_21] : memref<4x32x32xf32, #tpu.memory_space<vmem>>, vector<1x32x32xf32>
    %29 = vector.shape_cast %28 : vector<1x32x32xf32> to vector<32x32xf32>
    %cst_22 = arith.constant dense<0.000000e+00> : vector<8x32xf32>
    %30 = tpu.matmul %7, %29, %cst_22 {dimension_numbers = #tpu.dot_dimension_numbers<[1], [0], [0], [1], [0, 0, 1, 1], [], []>} : vector<8x32xf32>, vector<32x32xf32>, vector<8x32xf32> -> vector<8x32xf32>
    %c3_23 = arith.constant 3 : index
    %c0_24 = arith.constant 0 : index
    %c0_25 = arith.constant 0 : index
    %31 = vector.load %arg4[%c3_23, %c0_24, %c0_25] : memref<4x1x32xf32, #tpu.memory_space<vmem>>, vector<1x1x32xf32>
    %32 = vector.shape_cast %31 : vector<1x1x32xf32> to vector<1x32xf32>
    %33 = vector.broadcast %32 : vector<1x32xf32> to vector<8x32xf32>
    %34 = arith.addf %30, %33 : vector<8x32xf32>
    %35 = arith.negf %34 : vector<8x32xf32>
    %36 = math.exp %35 : vector<8x32xf32>
    %cst_26 = arith.constant 1.000000e+00 : f32
    %37 = vector.broadcast %cst_26 : f32 to vector<8x32xf32>
    %38 = arith.addf %37, %36 : vector<8x32xf32>
    %39 = arith.divf %37, %38 : vector<8x32xf32>
    %40 = arith.mulf %19, %27 : vector<8x32xf32>
    %41 = math.tanh %40 : vector<8x32xf32>
    %42 = arith.mulf %39, %41 : vector<8x32xf32>
    %c0_27 = arith.constant 0 : index
    %c0_28 = arith.constant 0 : index
    %43 = vector.load %arg5[%c0_27, %c0_28] : memref<32x8xf32, #tpu.memory_space<vmem>>, vector<32x8xf32>
    %cst_29 = arith.constant dense<0.000000e+00> : vector<8x8xf32>
    %44 = tpu.matmul %42, %43, %cst_29 {dimension_numbers = #tpu.dot_dimension_numbers<[1], [0], [0], [1], [0, 0, 1, 1], [], []>} : vector<8x32xf32>, vector<32x8xf32>, vector<8x8xf32> -> vector<8x8xf32>
    %c0_30 = arith.constant 0 : index
    %c0_31 = arith.constant 0 : index
    %45 = vector.load %arg6[%c0_30, %c0_31] : memref<1x8xf32, #tpu.memory_space<vmem>>, vector<1x8xf32>
    %46 = vector.broadcast %45 : vector<1x8xf32> to vector<8x8xf32>
    %47 = arith.addf %44, %46 : vector<8x8xf32>
    %c0_32 = arith.constant 0 : index
    %c0_33 = arith.constant 0 : index
    %48 = vector.load %arg7[%c0_32, %c0_33] : memref<8x8xf32, #tpu.memory_space<vmem>>, vector<8x8xf32>
    tpu.vector_store %arg7[%c0_32, %c0_33], %47 {strides = array<i32>} : memref<8x8xf32, #tpu.memory_space<vmem>>, vector<8x8xf32>,
    %c0_34 = arith.constant 0 : index
    %c0_35 = arith.constant 0 : index
    %49 = vector.load %arg8[%c0_34, %c0_35] : memref<8x32xf32, #tpu.memory_space<vmem>>, vector<8x32xf32>
    tpu.vector_store %arg8[%c0_34, %c0_35], %42 {strides = array<i32>} : memref<8x32xf32, #tpu.memory_space<vmem>>, vector<8x32xf32>,
    %c0_36 = arith.constant 0 : index
    %c0_37 = arith.constant 0 : index
    %50 = vector.load %arg9[%c0_36, %c0_37] : memref<8x32xf32, #tpu.memory_space<vmem>>, vector<8x32xf32>
    tpu.vector_store %arg9[%c0_36, %c0_37], %40 {strides = array<i32>} : memref<8x32xf32, #tpu.memory_space<vmem>>, vector<8x32xf32>,
    return
  }
}

</mosaic_0001>

<llo_original>
// kernel: tpu_custom_call.1
$region0: #{tpu_custom_call.1}
  #allocation0 [shape = 'u32[]', space=smem, size = 0x4, offset = 0x4, fixed_abs, tag = 'smem constant byte address 0x4 - core index']
  #allocation1 [shape = 'u32[72,128]{1,0:T(1,128)}', space=vmem, size = 0x9000, scoped, tag = 'internal scratch']
  %s0 = inlined_call_operand.vmem [shape: f32[8,16], index: 0, kind: input, shape index: {}]
  %s1 = inlined_call_operand.vmem [shape: f32[16,32], index: 1, kind: input, shape index: {}]
  %s2 = inlined_call_operand.vmem [shape: f32[1,32], index: 2, kind: input, shape index: {}]
  %s3 = inlined_call_operand.hbm [shape: f32[4,32,32], index: 3, kind: input, shape index: {}]
  %s4 = inlined_call_operand.vmem [shape: f32[4,1,32], index: 4, kind: input, shape index: {}]
  %s5 = inlined_call_operand.vmem [shape: f32[32,8], index: 5, kind: input, shape index: {}]
  %s6 = inlined_call_operand.vmem [shape: f32[1,8], index: 6, kind: input, shape index: {}]
  %s7 = inlined_call_operand.hbm [shape: f32[8,8], index: 7, kind: output, shape index: {0}]
  %s8 = inlined_call_operand.hbm [shape: f32[8,32], index: 8, kind: output, shape index: {1}]
  %s9 = inlined_call_operand.hbm [shape: f32[8,32], index: 9, kind: output, shape index: {2}]
  %10 = xla_tuple %s7, %s8, %s9
  %s11 = sld [smem:[#allocation0]]
  $region58: #{tpu_custom_call.1} parent=0
    _
  %s13 = ssub.s32 1, %s11
  %s14 = scalar_select 0, %s13, %s11
  $region1: #{tpu_custom_call.1} parent=0
    #allocation2 [shape = 'u8[65536]{0}', space=vmem, size = 0x10000, scoped, tag = 'input window, operand 3, single buffered']
    #allocation3 [shape = 's32[1]{0}', space=sflag, size = 0x4, scoped, tag = 'scoped memory for tpu_custom_call.1']
    #allocation4 [shape = 's32[1]{0}', space=sflag, size = 0x4, scoped, tag = 'scoped memory for tpu_custom_call.1']
    #allocation5 [shape = 'u8[4096]{0}', space=vmem, size = 0x1000, scoped, tag = 'output window, operand 0, single buffered']
    #allocation6 [shape = 'u8[4096]{0}', space=vmem, size = 0x1000, scoped, tag = 'output window, operand 1, single buffered']
    #allocation7 [shape = 's32[1]{0}', space=sflag, size = 0x4, scoped, tag = 'scoped memory for tpu_custom_call.1']
    #allocation8 [shape = 'u8[4096]{0}', space=vmem, size = 0x1000, scoped, tag = 'output window, operand 2, single buffered']
    %15 = vsyncpa [#allocation3], 0
    %16 = vsyncpa [#allocation4], 0
    %17 = vsyncpa [#allocation7], 0
    // Predicated region
    $region2: #{tpu_custom_call.1} parent=1 // pred_check
      _
    $region3: #{tpu_custom_call.1} parent=1 // pred_check_branch
      %19 = sbr.rel (0) target = $region5
    $region4: #{tpu_custom_call.1} parent=1 // pred_region
      _
    $region5: #{tpu_custom_call.1} parent=1 // pred_fallthru
      _
    // Predicated region
    $region6: #{tpu_custom_call.1} parent=1 // pred_check
      _
    $region7: #{tpu_custom_call.1} parent=1 // pred_check_branch
      %21 = sbr.rel (0) target = $region9
    $region8: #{tpu_custom_call.1} parent=1 // pred_region
      _
    $region9: #{tpu_custom_call.1} parent=1 // pred_fallthru
      _
    // Predicated region
    $region10: #{tpu_custom_call.1} parent=1 // pred_check
      _
    $region11: #{tpu_custom_call.1} parent=1 // pred_check_branch
      %23 = sbr.rel (0) target = $region13
    $region12: #{tpu_custom_call.1} parent=1 // pred_region
      _
    $region13: #{tpu_custom_call.1} parent=1 // pred_fallthru
      _
    // Predicated region
    $region14: #{tpu_custom_call.1} parent=1 // pred_check
      _
    $region15: #{tpu_custom_call.1} parent=1 // pred_check_branch
      %25 = sbr.rel (0) target = $region17
    $region16: #{tpu_custom_call.1} parent=1 // pred_region
      %27 = vsyncadd [#allocation3], 0
      %s28 = sshll.u32 %s3, 4
      %s29 = int_to_ptr.hbm [resolvable:$true] %s28
      %s30 = sshll.u32 [#allocation2], 4
      %s31 = int_to_ptr.vmem [resolvable:$true] %s30
      %36 = dma.hbm_to_vmem [thread:$0]  %s29, 2048, %s31, [#allocation3], 128, 128, 8
    $region17: #{tpu_custom_call.1} parent=1 // pred_fallthru
      _
    // Predicated region
    $region18: #{tpu_custom_call.1} parent=1 // pred_check
      _
    $region19: #{tpu_custom_call.1} parent=1 // pred_check_branch
      %38 = sbr.rel (0) target = $region21
    $region20: #{tpu_custom_call.1} parent=1 // pred_region
      _
    $region21: #{tpu_custom_call.1} parent=1 // pred_fallthru
      _
    // Predicated region
    $region22: #{tpu_custom_call.1} parent=1 // pred_check
      _
    $region23: #{tpu_custom_call.1} parent=1 // pred_check_branch
      %40 = sbr.rel (0) target = $region25
    $region24: #{tpu_custom_call.1} parent=1 // pred_region
      _
    $region25: #{tpu_custom_call.1} parent=1 // pred_fallthru
      _
    // Predicated region
    $region26: #{tpu_custom_call.1} parent=1 // pred_check
      _
    $region27: #{tpu_custom_call.1} parent=1 // pred_check_branch
      %42 = sbr.rel (0) target = $region29
    $region28: #{tpu_custom_call.1} parent=1 // pred_region
      _
    $region29: #{tpu_custom_call.1} parent=1 // pred_fallthru
      _
    // Predicated region
    $region30: #{tpu_custom_call.1} parent=1 // pred_check
      _
    $region31: #{tpu_custom_call.1} parent=1 // pred_check_branch
      %44 = sbr.rel (0) target = $region33
    $region32: #{tpu_custom_call.1} parent=1 // pred_region
      %46 = dma.done [#allocation3], 2048
    $region33: #{tpu_custom_call.1} parent=1 // pred_fallthru
      _
    %v47 = vld [vmem:[%s0] sm:$0xff]
    %v48 = vld [vmem:[%s1] sm:$0xff]
    %v49 = vld [vmem:[%s1 + $0x8] sm:$0xff]
    %v50 = vld [vmem:[%s2] sm:$0x1]
    %v52 = vperm.slane %v50, 0
    %vm54 = vcmask 130048
    %v56 = vsel %vm54, %v47, 0
    %58 = vmatpush.msra.mxu0 0.0
    %59 = vmatpush.msra.mxu0 0.0
    %60 = vmatpush.msra.mxu0 0.0
    %61 = vmatpush.msra.mxu0 0.0
    %62 = vmatpush.msra.mxu0 0.0
    %63 = vmatpush.msra.mxu0 0.0
    %64 = vmatpush.msra.mxu0 0.0
    %65 = vmatpush.msra.mxu0 0.0
    %66 = vmatpush.msra.mxu0 0.0
    %67 = vmatpush.msra.mxu0 0.0
    %68 = vmatpush.msra.mxu0 0.0
    %69 = vmatpush.msra.mxu0 0.0
    %70 = vmatpush.msra.mxu0 0.0
    %71 = vmatpush.msra.mxu0 0.0
    %72 = vmatpush.msra.mxu0 %v49
    %73 = vmatpush.msra.mxu0 %v48
    %74 = vmatmul.f32.gmra.mxu0 %v56
    %v75 = vpop.f32.mrf.mxu0
    %v76 = vadd.f32 %v52, %v75
    %77 = vdwg.mxu0
    %v78 = vmax.f32 %v76, 0.0
    %v79 = vld [vmem:[#allocation2] sm:$0xff]
    %v80 = vld [vmem:[#allocation2 + $0x8] sm:$0xff]
    %v81 = vld [vmem:[#allocation2 + $0x10] sm:$0xff]
    %v82 = vld [vmem:[#allocation2 + $0x18] sm:$0xff]
    %v83 = vld [vmem:[%s4] sm:$0x1]
    %v85 = vperm.slane %v83, 0
    %vm87 = vcmask 261120
    %v89 = vsel %vm87, %v78, 0
    %91 = vmatpush.msra.mxu0 0.0
    %92 = vmatpush.msra.mxu0 0.0
    %93 = vmatpush.msra.mxu0 0.0
    %94 = vmatpush.msra.mxu0 0.0
    %95 = vmatpush.msra.mxu0 0.0
    %96 = vmatpush.msra.mxu0 0.0
    %97 = vmatpush.msra.mxu0 0.0
    %98 = vmatpush.msra.mxu0 0.0
    %99 = vmatpush.msra.mxu0 0.0
    %100 = vmatpush.msra.mxu0 0.0
    %101 = vmatpush.msra.mxu0 0.0
    %102 = vmatpush.msra.mxu0 0.0
    %103 = vmatpush.msra.mxu0 %v82
    %104 = vmatpush.msra.mxu0 %v81
    %105 = vmatpush.msra.mxu0 %v80
    %106 = vmatpush.msra.mxu0 %v79
    %107 = vmatmul.f32.gmra.mxu0 %v89
    %v108 = vpop.f32.mrf.mxu0
    %v109 = vadd.f32 %v85, %v108
    %110 = vdwg.mxu0
    %v111 = vxor.u32 %v109, 2147483648
    %v112 = vmul.f32 %v111, 1.442695
    %v113 = vpow.pop %v112
    %v114 = vadd.f32 %v113, 1.0
    %v115 = vrcp.pop %v114
    %v116 = vmul.f32 %v114, %v115
    %v117 = vsub.f32 1.0, %v116
    %v118 = vmul.f32 %v115, %v117
    %v119 = vadd.f32 %v115, %v118
    %vm120 = vweird.f32 %v114
    %vm121 = vweird.f32 %v115
    %vm122 = vmor %vm120, %vm121
    %v123 = vsel %vm122, %v115, %v119
    %v124 = vand.u32 2147483647, %v114
    %vm125 = vcmp.eq.f32.partialorder %v124, 8.507059e+37
    %v126 = vand.u32 %v114, 2147483648
    %v127 = vor.u32 1.1754944e-38, %v126
    %v128 = vsel %vm125, %v127, %v123
    %v129 = vmul.f32 1.0, %v128
    %s130 = scalar_lea.vmem [#allocation2], 64
    %v131 = vld [vmem:[%s130] sm:$0xff]
    %v132 = vld [vmem:[%s130 + $0x8] sm:$0xff]
    %v133 = vld [vmem:[%s130 + $0x10] sm:$0xff]
    %v134 = vld [vmem:[%s130 + $0x18] sm:$0xff]
    %s135 = scalar_lea.vmem %s4, 2
    %v136 = vld [vmem:[%s135] sm:$0x1]
    %v138 = vperm.slane %v136, 0
    %140 = vmatpush.msra.mxu0 0.0
    %141 = vmatpush.msra.mxu0 0.0
    %142 = vmatpush.msra.mxu0 0.0
    %143 = vmatpush.msra.mxu0 0.0
    %144 = vmatpush.msra.mxu0 0.0
    %145 = vmatpush.msra.mxu0 0.0
    %146 = vmatpush.msra.mxu0 0.0
    %147 = vmatpush.msra.mxu0 0.0
    %148 = vmatpush.msra.mxu0 0.0
    %149 = vmatpush.msra.mxu0 0.0
    %150 = vmatpush.msra.mxu0 0.0
    %151 = vmatpush.msra.mxu0 0.0
    %152 = vmatpush.msra.mxu0 %v134
    %153 = vmatpush.msra.mxu0 %v133
    %154 = vmatpush.msra.mxu0 %v132
    %155 = vmatpush.msra.mxu0 %v131
    %156 = vmatmul.f32.gmra.mxu0 %v89
    %v157 = vpop.f32.mrf.mxu0
    %v158 = vadd.f32 %v138, %v157
    %159 = vdwg.mxu0
    %v160 = vtanh.pop %v158
    %s161 = scalar_lea.vmem [#allocation2], 96
    %v162 = vld [vmem:[%s161] sm:$0xff]
    %v163 = vld [vmem:[%s161 + $0x8] sm:$0xff]
    %v164 = vld [vmem:[%s161 + $0x10] sm:$0xff]
    %v165 = vld [vmem:[%s161 + $0x18] sm:$0xff]
    %s166 = scalar_lea.vmem %s4, 3
    %v167 = vld [vmem:[%s166] sm:$0x1]
    %v169 = vperm.slane %v167, 0
    %171 = vmatpush.msra.mxu0 0.0
    %172 = vmatpush.msra.mxu0 0.0
    %173 = vmatpush.msra.mxu0 0.0
    %174 = vmatpush.msra.mxu0 0.0
    %175 = vmatpush.msra.mxu0 0.0
    %176 = vmatpush.msra.mxu0 0.0
    %177 = vmatpush.msra.mxu0 0.0
    %178 = vmatpush.msra.mxu0 0.0
    %179 = vmatpush.msra.mxu0 0.0
    %180 = vmatpush.msra.mxu0 0.0
    %181 = vmatpush.msra.mxu0 0.0
    %182 = vmatpush.msra.mxu0 0.0
    %183 = vmatpush.msra.mxu0 %v165
    %184 = vmatpush.msra.mxu0 %v164
    %185 = vmatpush.msra.mxu0 %v163
    %186 = vmatpush.msra.mxu0 %v162
    %187 = vmatmul.f32.gmra.mxu0 %v89
    %v188 = vpop.f32.mrf.mxu0
    %v189 = vadd.f32 %v169, %v188
    %190 = vdwg.mxu0
    %v191 = vxor.u32 %v189, 2147483648
    %v192 = vmul.f32 %v191, 1.442695
    %v193 = vpow.pop %v192
    %v194 = vadd.f32 %v193, 1.0
    %v195 = vrcp.pop %v194
    %v196 = vmul.f32 %v194, %v195
    %v197 = vsub.f32 1.0, %v196
    %v198 = vmul.f32 %v195, %v197
    %v199 = vadd.f32 %v195, %v198
    %vm200 = vweird.f32 %v194
    %vm201 = vweird.f32 %v195
    %vm202 = vmor %vm200, %vm201
    %v203 = vsel %vm202, %v195, %v199
    %v204 = vand.u32 2147483647, %v194
    %vm205 = vcmp.eq.f32.partialorder %v204, 8.507059e+37
    %v206 = vand.u32 %v194, 2147483648
    %v207 = vor.u32 1.1754944e-38, %v206
    %v208 = vsel %vm205, %v207, %v203
    %v209 = vmul.f32 1.0, %v208
    %v210 = vmul.f32 %v129, %v160
    %v211 = vtanh.pop %v210
    %v212 = vmul.f32 %v209, %v211
    %v213 = vld [vmem:[%s5] sm:$0xff]
    %v214 = vld [vmem:[%s5 + $0x8] sm:$0xff]
    %v215 = vld [vmem:[%s5 + $0x10] sm:$0xff]
    %v216 = vld [vmem:[%s5 + $0x18] sm:$0xff]
    %v217 = vld [vmem:[%s6] sm:$0x1]
    %v219 = vperm.slane %v217, 0
    %v222 = vsel %vm87, %v212, 0
    %224 = vmatpush.msra.mxu0 0.0
    %225 = vmatpush.msra.mxu0 0.0
    %226 = vmatpush.msra.mxu0 0.0
    %227 = vmatpush.msra.mxu0 0.0
    %228 = vmatpush.msra.mxu0 0.0
    %229 = vmatpush.msra.mxu0 0.0
    %230 = vmatpush.msra.mxu0 0.0
    %231 = vmatpush.msra.mxu0 0.0
    %232 = vmatpush.msra.mxu0 0.0
    %233 = vmatpush.msra.mxu0 0.0
    %234 = vmatpush.msra.mxu0 0.0
    %235 = vmatpush.msra.mxu0 0.0
    %236 = vmatpush.msra.mxu0 %v216
    %237 = vmatpush.msra.mxu0 %v215
    %238 = vmatpush.msra.mxu0 %v214
    %239 = vmatpush.msra.mxu0 %v213
    %240 = vmatmul.f32.gmra.mxu0 %v222
    %v241 = vpop.f32.mrf.mxu0
    %v242 = vadd.f32 %v219, %v241
    %243 = vdwg.mxu0
    %vm244 = vcmask 64512
    %245 = vst.msk [vmem:[#allocation5] sm:$0xff] %vm244, %v242
    %246 = vst.msk [vmem:[#allocation6] sm:$0xff] %vm87, %v212
    %247 = vst.msk [vmem:[#allocation8] sm:$0xff] %vm87, %v210
    // Predicated region
    $region34: #{tpu_custom_call.1} parent=1 // pred_check
      _
    $region35: #{tpu_custom_call.1} parent=1 // pred_check_branch
      %249 = sbr.rel (0) target = $region37
    $region36: #{tpu_custom_call.1} parent=1 // pred_region
      %251 = vsyncadd [#allocation4], 0
      %s253 = sshll.u32 [#allocation5], 4
      %s254 = int_to_ptr.vmem [resolvable:$true] %s253
      %s255 = sshll.u32 %s7, 4
      %s256 = int_to_ptr.hbm [resolvable:$true] %s255
      %258 = dma.vmem_to_hbm [thread:$0]  %s254, 128, %s256, [#allocation4]
    $region37: #{tpu_custom_call.1} parent=1 // pred_fallthru
      _
    // Predicated region
    $region38: #{tpu_custom_call.1} parent=1 // pred_check
      _
    $region39: #{tpu_custom_call.1} parent=1 // pred_check_branch
      %260 = sbr.rel (0) target = $region41
    $region40: #{tpu_custom_call.1} parent=1 // pred_region
      %262 = vsyncadd [#allocation7], 0
      %s264 = sshll.u32 [#allocation6], 4
      %s265 = int_to_ptr.vmem [resolvable:$true] %s264
      %s266 = sshll.u32 %s8, 4
      %s267 = int_to_ptr.hbm [resolvable:$true] %s266
      %269 = dma.vmem_to_hbm [thread:$0]  %s265, 128, %s267, [#allocation7]
    $region41: #{tpu_custom_call.1} parent=1 // pred_fallthru
      _
    // Predicated region
    $region42: #{tpu_custom_call.1} parent=1 // pred_check
      _
    $region43: #{tpu_custom_call.1} parent=1 // pred_check_branch
      %271 = sbr.rel (0) target = $region45
    $region44: #{tpu_custom_call.1} parent=1 // pred_region
      %273 = vsyncadd [#allocation7], 0
      %s275 = sshll.u32 [#allocation8], 4
      %s276 = int_to_ptr.vmem [resolvable:$true] %s275
      %s277 = sshll.u32 %s9, 4
      %s278 = int_to_ptr.hbm [resolvable:$true] %s277
      %280 = dma.vmem_to_hbm [thread:$0]  %s276, 128, %s278, [#allocation7]
    $region45: #{tpu_custom_call.1} parent=1 // pred_fallthru
      _
    // Predicated region
    $region46: #{tpu_custom_call.1} parent=1 // pred_check
      _
    $region47: #{tpu_custom_call.1} parent=1 // pred_check_branch
      %282 = sbr.rel (0) target = $region49
    $region48: #{tpu_custom_call.1} parent=1 // pred_region
      %284 = dma.done [#allocation4], 128
    $region49: #{tpu_custom_call.1} parent=1 // pred_fallthru
      _
    // Predicated region
    $region50: #{tpu_custom_call.1} parent=1 // pred_check
      _
    $region51: #{tpu_custom_call.1} parent=1 // pred_check_branch
      %286 = sbr.rel (0) target = $region53
    $region52: #{tpu_custom_call.1} parent=1 // pred_region
      %288 = dma.done [#allocation7], 128
    $region53: #{tpu_custom_call.1} parent=1 // pred_fallthru
      _
    // Predicated region
    $region54: #{tpu_custom_call.1} parent=1 // pred_check
      _
    $region55: #{tpu_custom_call.1} parent=1 // pred_check_branch
      %290 = sbr.rel (0) target = $region57
    $region56: #{tpu_custom_call.1} parent=1 // pred_region
      %292 = dma.done [#allocation7], 128
    $region57: #{tpu_custom_call.1} parent=1 // pred_fallthru
      _
    %293 = vsyncpa [#allocation3], 1
    %294 = vsyncpa [#allocation4], 1
    %295 = vsyncpa [#allocation7], 1

</llo_original>
